<compile_context>
chip_gen: v7x
topology: tpu7x:2x2x1
jax: 0.10.0
libtpu: 0.0.40
codegen_flags: <defaults>
</compile_context>

<pallas_src>
import functools

import jax
import jax.numpy as jnp
import numpy as np
from jax.experimental import pallas as pl
from jax.experimental.pallas import tpu as pltpu

EPS = 1e-5
LANES = 128


def _round_up(x, m):
    return (x + m - 1) // m * m


def _vmem_limit_bytes():
    # Generation-aware scoped-VMEM limit: v5e/v6e have 128 MiB physical VMEM,
    # v7x only 64 MiB.  Take ~3/4 of physical, capped at 96 MiB.
    try:
        cap = int(pltpu.get_tpu_info().vmem_capacity_bytes)
    except Exception:
        cap = 64 * 1024 * 1024
    return int(min(96 * 1024 * 1024, (cap * 3) // 4))


def _compiler_params():
    return pltpu.CompilerParams(
        dimension_semantics=("parallel",),      # shard the batch grid over TCs
        vmem_limit_bytes=_vmem_limit_bytes())


# ----------------------------- Pallas kernels ------------------------------

def _bn_scale_shift(stats_ref, g_ref, b_ref, inv_count):
    """Fused training-mode BN: y_norm = y*scale + shift (one mul + one add).

    stats_ref: (N, 2, Cpad) per-image [sum, sum_sq]; reduced over the batch
    here so tiling over the batch grid never corrupts the statistics.
    """
    s = jnp.sum(stats_ref[...], axis=0)              # (2, Cpad) over the batch
    mean = s[0:1, :] * inv_count                     # (1, Cpad)
    var = s[1:2, :] * inv_count - mean * mean        # biased variance
    scale = g_ref[...] * jax.lax.rsqrt(var + EPS)
    shift = b_ref[...] - mean * scale
    return scale, shift


def conv1_stats_kernel(taps_ref, w_ref, b_ref, out_ref, st_ref):
    """conv1 (+bias) for one image as a single lane-dense MXU matmul + BN stats.

    taps_ref: (1, M, Kpad)  bf16   im2col taps (K*K*Cin zero-padded to Kpad)
    w_ref   : (Kpad, Cpad)  bf16   folded conv1 weight
    b_ref   : (1, Cpad)     f32    conv1 bias (zero in padded channels)
    out_ref : (1, M, Cpad)  bf16   raw conv1 output (pre-BN), stored bf16
    st_ref  : (1, 2, Cpad)  f32    per-image [sum, sum_sq] from the f32 acc
    """
    y = jnp.dot(taps_ref[0], w_ref[...],
                preferred_element_type=jnp.float32) + b_ref[...]
    out_ref[0] = y.astype(out_ref.dtype)             # downcast AFTER stats src
    st_ref[0] = jnp.concatenate(
        [jnp.sum(y, axis=0, keepdims=True),
         jnp.sum(y * y, axis=0, keepdims=True)], axis=0)


def conv2_bn1_relu_stats_kernel(y1_ref, st1_ref, g1_ref, b1_ref, w2_ref, b2_ref,
                                out_ref, st2_ref, z_ref, *, K, Ho, Wo,
                                inv_count):
    """bn1 + relu fused into conv2 (+bias) for one image, plus bn2 stats.

    y1_ref : (1, M, Cpad)        bf16  raw conv1 output
    st1_ref: (N, 2, Cpad)        f32   full-batch bn1 statistics
    w2_ref : (K*K*Cpad, Cpad)    bf16  folded conv2 weight (per-tap Cpad rows)
    out_ref: (1, M, Cpad)        bf16  raw conv2 output (pre-BN)
    st2_ref: (1, 2, Cpad)        f32   per-image bn2 [sum, sum_sq]
    z_ref  : (Ho+2, Wo+2, Cpad)  bf16  VMEM scratch: padded bn1(relu) plane.
             The halo only exists in VMEM — the old y1p HBM array is gone.
    """
    cpad = out_ref.shape[-1]

    # bn1 + relu applied on-chip (scale/shift from the full-batch f32 stats).
    scale, shift = _bn_scale_shift(st1_ref, g1_ref, b1_ref, inv_count)
    y1 = jnp.maximum(y1_ref[0].astype(jnp.float32) * scale + shift, 0.0)
    y1 = y1.astype(jnp.bfloat16).reshape(Ho, Wo, cpad)

    # Zero halo + interior write.  This is VMEM-only (cheap); the HBM
    # double-write of the previous bn_relu_pad kernel no longer exists.
    z_ref[...] = jnp.zeros_like(z_ref)
    z_ref[1:1 + Ho, 1:1 + Wo, :] = y1

    # conv2 as a sum of K*K tap matmuls (no taps concatenate), f32 accumulate.
    acc = jnp.zeros((Ho * Wo, cpad), jnp.float32)
    for kh in range(K):                                # static taps
        for kw in range(K):
            slab = z_ref[kh:kh + Ho, kw:kw + Wo, :].reshape(Ho * Wo, cpad)
            t = kh * K + kw
            acc = acc + jnp.dot(slab, w2_ref[t * cpad:(t + 1) * cpad, :],
                                preferred_element_type=jnp.float32)
    y2 = acc + b2_ref[...]
    out_ref[0] = y2.astype(out_ref.dtype)              # bf16 store
    st2_ref[0] = jnp.concatenate(
        [jnp.sum(y2, axis=0, keepdims=True),
         jnp.sum(y2 * y2, axis=0, keepdims=True)], axis=0)


def bn2_add_relu_kernel(y2_ref, st2_ref, g_ref, b_ref, sc_ref, o_ref, *,
                        inv_count):
    """relu(bn2(conv2) + X) — identity shortcut.

    sc_ref is the UNPADDED (1, M, Cin) shortcut; it is widened to Cpad lanes
    in-kernel, avoiding a padded (N, M, 128) shortcut array in HBM.
    """
    scale, shift = _bn_scale_shift(st2_ref, g_ref, b_ref, inv_count)
    y = y2_ref[0].astype(jnp.float32) * scale + shift
    sc = sc_ref[0].astype(jnp.float32)
    cpad = y.shape[-1]
    cin = sc.shape[-1]
    if cin < cpad:                                     # static (trace-time)
        sc = jnp.concatenate(
            [sc, jnp.zeros((sc.shape[0], cpad - cin), jnp.float32)], axis=-1)
    o_ref[0] = jnp.maximum(y + sc, 0.0).astype(o_ref.dtype)


def bn2_conv1x1_add_relu_kernel(y2_ref, st2_ref, g_ref, b_ref,
                                taps_ref, w3_ref, b3_ref, o_ref, *, inv_count):
    """relu(bn2(conv2) + conv3(X)) — 1x1-conv shortcut fused as an MXU matmul.

    taps_ref is the SAME conv1 im2col array (its center tap holds x at the
    strided output positions), so no separate shortcut activation is built.
    """
    scale, shift = _bn_scale_shift(st2_ref, g_ref, b_ref, inv_count)
    y = y2_ref[0].astype(jnp.float32) * scale + shift
    sc = jnp.dot(taps_ref[0], w3_ref[...],
                 preferred_element_type=jnp.float32) + b3_ref[...]
    o_ref[0] = jnp.maximum(y + sc, 0.0).astype(o_ref.dtype)


# ------------------------------ pallas_call glue ----------------------------

def conv1_stats(taps, w, b, *, cpad):
    n, m, kpad = taps.shape
    cost = pl.CostEstimate(
        flops=int(2 * n * m * kpad * cpad), transcendentals=0,
        bytes_accessed=int(taps.size * 2 + w.size * 2 + b.size * 4
                           + n * m * cpad * 2 + n * 2 * cpad * 4))
    return pl.pallas_call(
        conv1_stats_kernel,
        out_shape=(jax.ShapeDtypeStruct((n, m, cpad), jnp.bfloat16),
                   jax.ShapeDtypeStruct((n, 2, cpad), jnp.float32)),
        grid=(n,),
        in_specs=[
            pl.BlockSpec((1, m, kpad), lambda i: (i, 0, 0)),
            pl.BlockSpec(w.shape, lambda i: (0, 0)),
            pl.BlockSpec(b.shape, lambda i: (0, 0)),
        ],
        out_specs=(
            pl.BlockSpec((1, m, cpad), lambda i: (i, 0, 0)),
            pl.BlockSpec((1, 2, cpad), lambda i: (i, 0, 0)),
        ),
        compiler_params=_compiler_params(),
        cost_estimate=cost,
    )(taps, w, b)


def conv2_bn1_fused(y1_raw, st1, g1, b1, w2, b2, *, K, Ho, Wo):
    n, m, cpad = y1_raw.shape
    kern = functools.partial(conv2_bn1_relu_stats_kernel, K=K, Ho=Ho, Wo=Wo,
                             inv_count=1.0 / (n * m))
    cost = pl.CostEstimate(
        flops=int(2 * n * m * (K * K * cpad) * cpad), transcendentals=0,
        bytes_accessed=int(y1_raw.size * 2 + st1.size * 4 + w2.size * 2
                           + n * m * cpad * 2 + n * 2 * cpad * 4))
    return pl.pallas_call(
        kern,
        out_shape=(jax.ShapeDtypeStruct((n, m, cpad), jnp.bfloat16),
                   jax.ShapeDtypeStruct((n, 2, cpad), jnp.float32)),
        grid=(n,),
        in_specs=[
            pl.BlockSpec((1, m, cpad), lambda i: (i, 0, 0)),
            pl.BlockSpec(st1.shape, lambda i: (0, 0, 0)),
            pl.BlockSpec(g1.shape, lambda i: (0, 0)),
            pl.BlockSpec(b1.shape, lambda i: (0, 0)),
            pl.BlockSpec(w2.shape, lambda i: (0, 0)),
            pl.BlockSpec(b2.shape, lambda i: (0, 0)),
        ],
        out_specs=(
            pl.BlockSpec((1, m, cpad), lambda i: (i, 0, 0)),
            pl.BlockSpec((1, 2, cpad), lambda i: (i, 0, 0)),
        ),
        scratch_shapes=[pltpu.VMEM((Ho + 2, Wo + 2, cpad), jnp.bfloat16)],
        compiler_params=_compiler_params(),
        cost_estimate=cost,
    )(y1_raw, st1, g1, b1, w2, b2)


def bn2_add_relu(y2_raw, st2, g, b, sc):
    n, m, cpad = y2_raw.shape
    kern = functools.partial(bn2_add_relu_kernel, inv_count=1.0 / (n * m))
    cost = pl.CostEstimate(
        flops=int(4 * n * m * cpad), transcendentals=0,
        bytes_accessed=int(y2_raw.size * 2 + sc.size * 4 + n * m * cpad * 4))
    return pl.pallas_call(
        kern,
        out_shape=jax.ShapeDtypeStruct((n, m, cpad), jnp.float32),
        grid=(n,),
        in_specs=[
            pl.BlockSpec((1, m, cpad), lambda i: (i, 0, 0)),
            pl.BlockSpec(st2.shape, lambda i: (0, 0, 0)),
            pl.BlockSpec(g.shape, lambda i: (0, 0)),
            pl.BlockSpec(b.shape, lambda i: (0, 0)),
            pl.BlockSpec((1, m, sc.shape[-1]), lambda i: (i, 0, 0)),
        ],
        out_specs=pl.BlockSpec((1, m, cpad), lambda i: (i, 0, 0)),
        compiler_params=_compiler_params(),
        cost_estimate=cost,
    )(y2_raw, st2, g, b, sc)


def bn2_conv1x1_add_relu(y2_raw, st2, g, b, taps1, w3, b3):
    n, m, cpad = y2_raw.shape
    kpad = taps1.shape[-1]
    kern = functools.partial(bn2_conv1x1_add_relu_kernel,
                             inv_count=1.0 / (n * m))
    cost = pl.CostEstimate(
        flops=int(2 * n * m * kpad * cpad + 4 * n * m * cpad),
        transcendentals=0,
        bytes_accessed=int(y2_raw.size * 2 + taps1.size * 2 + w3.size * 2
                           + n * m * cpad * 4))
    return pl.pallas_call(
        kern,
        out_shape=jax.ShapeDtypeStruct((n, m, cpad), jnp.float32),
        grid=(n,),
        in_specs=[
            pl.BlockSpec((1, m, cpad), lambda i: (i, 0, 0)),
            pl.BlockSpec(st2.shape, lambda i: (0, 0, 0)),
            pl.BlockSpec(g.shape, lambda i: (0, 0)),
            pl.BlockSpec(b.shape, lambda i: (0, 0)),
            pl.BlockSpec((1, m, kpad), lambda i: (i, 0, 0)),
            pl.BlockSpec(w3.shape, lambda i: (0, 0)),
            pl.BlockSpec(b3.shape, lambda i: (0, 0)),
        ],
        out_specs=pl.BlockSpec((1, m, cpad), lambda i: (i, 0, 0)),
        compiler_params=_compiler_params(),
        cost_estimate=cost,
    )(y2_raw, st2, g, b, taps1, w3, b3)


# --------------------------- wrapper-side layout -----------------------------

def _im2col(x_nhwc, K, stride, pad, ho, wo, kpad):
    """Lane-dense im2col for a SMALL-Cin conv: (N,H,W,C) -> (N, ho*wo, kpad)
    bf16 with tap-major / channel-minor ordering, zero-padded to kpad lanes.
    For Cin=4 the real width is only K*K*Cin = 36, so there is no real blowup.
    """
    n = x_nhwc.shape[0]
    xp = jnp.pad(x_nhwc, ((0, 0), (pad, pad), (pad, pad), (0, 0)))
    cols = []
    for kh in range(K):
        for kw in range(K):
            cols.append(xp[:, kh:kh + (ho - 1) * stride + 1:stride,
                           kw:kw + (wo - 1) * stride + 1:stride, :])
    t = jnp.stack(cols, axis=3)                          # (n, ho, wo, K*K, c)
    c = t.shape[-1]
    t = t.reshape(n, ho * wo, K * K * c)
    t = jnp.pad(t, ((0, 0), (0, 0), (0, kpad - K * K * c)))
    return t.astype(jnp.bfloat16)


def _fold_w_flat(w_oihw, kpad, cpad):
    """OIHW -> (kpad, cpad) bf16, rows = tap-major/channel-minor (im2col frame),
    zero rows appended up to kpad, output channels zero-padded to cpad."""
    cout, cin, kh, kw = w_oihw.shape
    w = jnp.transpose(w_oihw, (2, 3, 1, 0)).reshape(kh * kw * cin, cout)
    w = jnp.pad(w, ((0, kpad - kh * kw * cin), (0, cpad - cout)))
    return w.astype(jnp.bfloat16)


def _fold_w_grouped(w_oihw, cin_pad, cpad):
    """OIHW -> (K*K*cin_pad, cpad) bf16 with per-tap channel padding (conv2's
    input activations carry cin_pad channels, padded ones exactly zero)."""
    cout, cin, kh, kw = w_oihw.shape
    w = jnp.transpose(w_oihw, (2, 3, 1, 0))              # (kh, kw, cin, cout)
    w = jnp.pad(w, ((0, 0), (0, 0), (0, cin_pad - cin), (0, cpad - cout)))
    return w.reshape(kh * kw * cin_pad, cpad).astype(jnp.bfloat16)


def _fold_w3_center(w3_oihw, cin, K, kpad, cpad):
    """1x1 shortcut weight folded onto the CENTER tap rows of the conv1
    im2col frame, so the shortcut matmul reuses the existing taps array."""
    cout = w3_oihw.shape[0]
    wt = jnp.transpose(w3_oihw[:, :, 0, 0], (1, 0))      # (cin, cout)
    ctr = (K // 2) * K + (K // 2)
    full = jnp.zeros((kpad, cpad), jnp.float32)
    full = full.at[ctr * cin:(ctr + 1) * cin, :cout].set(wt)
    return full.astype(jnp.bfloat16)


def _pad_vec(v, cpad):
    return jnp.pad(v, (0, cpad - v.shape[0])).reshape(1, cpad).astype(jnp.float32)


def residual_forward(x_nchw, params, stride=1, use_1x1conv=False):
    x = jnp.transpose(x_nchw, (0, 2, 3, 1)).astype(jnp.float32)   # NHWC
    n, h, w, cin = x.shape
    cout = params["conv1_w"].shape[0]
    cpad = _round_up(cout, LANES)
    K = 3
    ho = (h + 2 - K) // stride + 1
    wo = (w + 2 - K) // stride + 1
    m = ho * wo
    kpad1 = _round_up(K * K * cin, LANES)

    # --- conv1 (3x3, pad 1, stride): lane-dense im2col matmul + bn1 stats ---
    # TODO(synk): for large Cin / spatial sizes, switch conv1 back to a tiled
    # phase-split path (avoids the K*K im2col expansion) and add an M row-tile
    # grid axis with halo handling to bound per-block VMEM on v7x's 64 MiB.
    taps1 = _im2col(x, K, stride, 1, ho, wo, kpad1)               # bf16
    y1_raw, st1 = conv1_stats(
        taps1, _fold_w_flat(params["conv1_w"], kpad1, cpad),
        _pad_vec(params["conv1_b"], cpad), cpad=cpad)

    # --- bn1 + relu fused into conv2 (3x3, pad 1, stride 1) + bn2 stats ---
    y2_raw, st2 = conv2_bn1_fused(
        y1_raw, st1, _pad_vec(params["bn1_g"], cpad),
        _pad_vec(params["bn1_b"], cpad),
        _fold_w_grouped(params["conv2_w"], cpad, cpad),
        _pad_vec(params["conv2_b"], cpad), K=K, Ho=ho, Wo=wo)

    # --- bn2 + shortcut + relu ---
    g2 = _pad_vec(params["bn2_g"], cpad)
    b2 = _pad_vec(params["bn2_b"], cpad)
    if use_1x1conv:
        # 1x1-conv shortcut: reuse the conv1 taps (center tap == strided x).
        out = bn2_conv1x1_add_relu(
            y2_raw, st2, g2, b2, taps1,
            _fold_w3_center(params["conv3_w"], cin, K, kpad1, cpad),
            _pad_vec(params["conv3_b"], cpad))
    else:
        # Identity shortcut (requires stride == 1 and cin == cout, as PyTorch).
        assert stride == 1 and cin == cout
        sc = x.reshape(n, h * w, cin)            # unpadded; widened in-kernel
        out = bn2_add_relu(y2_raw, st2, g2, b2, sc)

    out = out.reshape(n, ho, wo, cpad)[:, :, :, :cout]
    return jnp.transpose(out, (0, 3, 1, 2))                       # back to NCHW


# ---------------------- deterministic params + JAX reference ----------------

def init_params(key, cin, cout, use_1x1conv):
    ks = jax.random.split(key, 10)
    p = {
        "conv1_w": 0.1 * jax.random.normal(ks[0], (cout, cin, 3, 3), jnp.float32),
        "conv1_b": 0.1 * jax.random.normal(ks[1], (cout,), jnp.float32),
        "conv2_w": 0.1 * jax.random.normal(ks[2], (cout, cout, 3, 3), jnp.float32),
        "conv2_b": 0.1 * jax.random.normal(ks[3], (cout,), jnp.float32),
        "bn1_g": 1.0 + 0.1 * jax.random.normal(ks[4], (cout,), jnp.float32),
        "bn1_b": 0.1 * jax.random.normal(ks[5], (cout,), jnp.float32),
        "bn2_g": 1.0 + 0.1 * jax.random.normal(ks[6], (cout,), jnp.float32),
        "bn2_b": 0.1 * jax.random.normal(ks[7], (cout,), jnp.float32),
    }
    if use_1x1conv:
        p["conv3_w"] = 0.1 * jax.random.normal(ks[8], (cout, cin, 1, 1), jnp.float32)
        p["conv3_b"] = 0.1 * jax.random.normal(ks[9], (cout,), jnp.float32)
    return p


def _conv_ref(x, w, b, stride, pad):
    y = jax.lax.conv_general_dilated(
        x, w, (stride, stride), [(pad, pad), (pad, pad)],
        dimension_numbers=("NCHW", "OIHW", "NCHW"),
        precision=jax.lax.Precision.HIGHEST)
    return y + b[None, :, None, None]


def _bn_ref(x, g, b):
    mu = jnp.mean(x, axis=(0, 2, 3), keepdims=True)
    var = jnp.mean((x - mu) ** 2, axis=(0, 2, 3), keepdims=True)
    return (x - mu) * jax.lax.rsqrt(var + EPS) * g[None, :, None, None] \
        + b[None, :, None, None]


def residual_ref(x, p, stride, use_1x1conv):
    y = jax.nn.relu(_bn_ref(_conv_ref(x, p["conv1_w"], p["conv1_b"], stride, 1),
                            p["bn1_g"], p["bn1_b"]))
    y = _bn_ref(_conv_ref(y, p["conv2_w"], p["conv2_b"], 1, 1),
                p["bn2_g"], p["bn2_b"])
    sc = _conv_ref(x, p["conv3_w"], p["conv3_b"], stride, 0) if use_1x1conv else x
    return jax.nn.relu(y + sc)


# ----------------------------------- main -----------------------------------

if __name__ == "__main__":
    key = jax.random.PRNGKey(0)
    kx, kp1, kp2 = jax.random.split(key, 3)

    x = jax.random.normal(kx, (2, 4, 16, 16), jnp.float32)   # NCHW

    # Tolerance note: the Pallas path uses bf16 MXU inputs AND bf16 HBM
    # intermediates (f32 accumulation / f32 BN stats); the reference uses
    # Precision.HIGHEST f32 convs -> differences of ~1e-2 post-BN are
    # expected; 5e-2 still catches any structural bug.
    TOL = 5e-2

    # Case 1: identity shortcut (in_channels == out_channels, stride=1)
    p1 = init_params(kp1, 4, 4, use_1x1conv=False)
    out1 = jax.block_until_ready(residual_forward(x, p1, stride=1, use_1x1conv=False))
    ref1 = residual_ref(x, p1, 1, False)
    assert out1.shape == (2, 4, 16, 16)
    assert np.allclose(np.asarray(out1), np.asarray(ref1), atol=TOL, rtol=TOL)

    # Case 2: 1x1-conv shortcut, stride=2, channel change 4 -> 8
    p2 = init_params(kp2, 4, 8, use_1x1conv=True)
    out2 = jax.block_until_ready(residual_forward(x, p2, stride=2, use_1x1conv=True))
    ref2 = residual_ref(x, p2, 2, True)
    assert out2.shape == (2, 8, 8, 8)
    assert np.allclose(np.asarray(out2), np.asarray(ref2), atol=TOL, rtol=TOL)

    # TODO(synk): BatchNorm running_mean/running_var buffer updates (training-time
    # side effect) are not modeled; the forward output does not depend on them.
    print("KERNEL_OK")
</pallas_src>

<mosaic_0001>
module attributes {stable_mosaic.version = 11 : i64} {
  func.func @conv1_stats_kernel(%arg0: i32, %arg1: memref<1x256x128xbf16, #tpu.memory_space<vmem>>, %arg2: memref<128x128xbf16, #tpu.memory_space<vmem>>, %arg3: memref<1x128xf32, #tpu.memory_space<vmem>>, %arg4: memref<1x256x128xbf16, #tpu.memory_space<vmem>>, %arg5: memref<1x2x128xf32, #tpu.memory_space<vmem>>) attributes {dimension_semantics = [#tpu.dimension_semantics<parallel>], iteration_bounds = array<i64: 2>, scalar_prefetch = 0 : i64, scratch_operands = 0 : i64, tpu.core_type = #tpu.core_type<tc>, window_params = [{transform_indices = @transform_0, window_bounds = array<i64: 1, 256, 128>}, {pipeline_mode = #tpu.pipeline_mode<synchronous>, transform_indices = @transform_1, window_bounds = array<i64: 128, 128>}, {pipeline_mode = #tpu.pipeline_mode<synchronous>, transform_indices = @transform_2, window_bounds = array<i64: 1, 128>}, {transform_indices = @transform_3, window_bounds = array<i64: 1, 256, 128>}, {transform_indices = @transform_4, window_bounds = array<i64: 1, 2, 128>}]} {
    %c0 = arith.constant 0 : index
    %c0_0 = arith.constant 0 : index
    %c0_1 = arith.constant 0 : index
    %0 = vector.load %arg1[%c0, %c0_0, %c0_1] : memref<1x256x128xbf16, #tpu.memory_space<vmem>>, vector<1x256x128xbf16>
    %1 = vector.shape_cast %0 : vector<1x256x128xbf16> to vector<256x128xbf16>
    %c0_2 = arith.constant 0 : index
    %c0_3 = arith.constant 0 : index
    %2 = vector.load %arg2[%c0_2, %c0_3] : memref<128x128xbf16, #tpu.memory_space<vmem>>, vector<128x128xbf16>
    %cst = arith.constant dense<0.000000e+00> : vector<256x128xf32>
    %3 = tpu.matmul %1, %2, %cst {dimension_numbers = #tpu.dot_dimension_numbers<[1], [0], [0], [1], [0, 0, 1, 1], [], []>} : vector<256x128xbf16>, vector<128x128xbf16>, vector<256x128xf32> -> vector<256x128xf32>
    %c0_4 = arith.constant 0 : index
    %c0_5 = arith.constant 0 : index
    %4 = vector.load %arg3[%c0_4, %c0_5] : memref<1x128xf32, #tpu.memory_space<vmem>>, vector<1x128xf32>
    %5 = vector.broadcast %4 : vector<1x128xf32> to vector<256x128xf32>
    %6 = arith.addf %3, %5 : vector<256x128xf32>
    %7 = arith.truncf %6 : vector<256x128xf32> to vector<256x128xbf16>
    %c0_6 = arith.constant 0 : index
    %c0_7 = arith.constant 0 : index
    %c0_8 = arith.constant 0 : index
    %8 = vector.load %arg4[%c0_6, %c0_7, %c0_8] : memref<1x256x128xbf16, #tpu.memory_space<vmem>>, vector<1x256x128xbf16>
    %9 = vector.shape_cast %8 : vector<1x256x128xbf16> to vector<256x128xbf16>
    %10 = vector.shape_cast %7 : vector<256x128xbf16> to vector<1x256x128xbf16>
    tpu.vector_store %arg4[%c0_6, %c0_7, %c0_8], %10 {strides = array<i32>} : memref<1x256x128xbf16, #tpu.memory_space<vmem>>, vector<1x256x128xbf16>,
    %cst_9 = arith.constant dense<0.000000e+00> : vector<128xf32>
    %11 = vector.multi_reduction <add>, %6, %cst_9 [0] : vector<256x128xf32> to vector<128xf32>
    %12 = vector.shape_cast %11 : vector<128xf32> to vector<1x128xf32>
    %13 = arith.mulf %6, %6 : vector<256x128xf32>
    %cst_10 = arith.constant dense<0.000000e+00> : vector<128xf32>
    %14 = vector.multi_reduction <add>, %13, %cst_10 [0] : vector<256x128xf32> to vector<128xf32>
    %15 = vector.shape_cast %14 : vector<128xf32> to vector<1x128xf32>
    %16 = tpu.concatenate %12, %15 in 0 : vector<1x128xf32>, vector<1x128xf32> -> vector<2x128xf32>
    %c0_11 = arith.constant 0 : index
    %c0_12 = arith.constant 0 : index
    %c0_13 = arith.constant 0 : index
    %17 = vector.load %arg5[%c0_11, %c0_12, %c0_13] : memref<1x2x128xf32, #tpu.memory_space<vmem>>, vector<1x2x128xf32>
    %18 = vector.shape_cast %17 : vector<1x2x128xf32> to vector<2x128xf32>
    %19 = vector.shape_cast %16 : vector<2x128xf32> to vector<1x2x128xf32>
    tpu.vector_store %arg5[%c0_11, %c0_12, %c0_13], %19 {strides = array<i32>} : memref<1x2x128xf32, #tpu.memory_space<vmem>>, vector<1x2x128xf32>,
    return
  }
  func.func @transform_0(%arg0: i32) -> (i32, i32, i32) {
    %c0_i32 = arith.constant 0 : i32
    %c0_i32_0 = arith.constant 0 : i32
    %c0_i32_1 = arith.constant 0 : i32
    return %arg0, %c0_i32, %c0_i32_0 : i32, i32, i32
  }
  func.func @transform_1(%arg0: i32) -> (i32, i32) {
    %c0_i32 = arith.constant 0 : i32
    %c0_i32_0 = arith.constant 0 : i32
    %c0_i32_1 = arith.constant 0 : i32
    return %c0_i32, %c0_i32_0 : i32, i32
  }
  func.func @transform_2(%arg0: i32) -> (i32, i32) {
    %c0_i32 = arith.constant 0 : i32
    %c0_i32_0 = arith.constant 0 : i32
    %c0_i32_1 = arith.constant 0 : i32
    return %c0_i32, %c0_i32_0 : i32, i32
  }
  func.func @transform_3(%arg0: i32) -> (i32, i32, i32) {
    %c0_i32 = arith.constant 0 : i32
    %c0_i32_0 = arith.constant 0 : i32
    %c0_i32_1 = arith.constant 0 : i32
    return %arg0, %c0_i32, %c0_i32_0 : i32, i32, i32
  }
  func.func @transform_4(%arg0: i32) -> (i32, i32, i32) {
    %c0_i32 = arith.constant 0 : i32
    %c0_i32_0 = arith.constant 0 : i32
    %c0_i32_1 = arith.constant 0 : i32
    return %arg0, %c0_i32, %c0_i32_0 : i32, i32, i32
  }
}

</mosaic_0001>

<llo_original>
// kernel: tpu_custom_call.1
$region0: #{tpu_custom_call.1}
  #allocation0 [shape = 'u32[]', space=smem, size = 0x4, offset = 0x4, fixed_abs, tag = 'smem constant byte address 0x4 - core index']
  #allocation1 [shape = 'u32[144,128]{1,0:T(1,128)}', space=vmem, size = 0x12000, scoped, tag = 'internal scratch']
  %s0 = inlined_call_operand.hbm [shape: bf16[2,256,128], index: 0, kind: input, shape index: {}]
  %s1 = inlined_call_operand.hbm [shape: bf16[128,128], index: 1, kind: input, shape index: {}]
  %s2 = inlined_call_operand.vmem [shape: f32[1,128], index: 2, kind: input, shape index: {}]
  %s3 = inlined_call_operand.hbm [shape: bf16[2,256,128], index: 3, kind: output, shape index: {0}]
  %s4 = inlined_call_operand.hbm [shape: f32[2,2,128], index: 4, kind: output, shape index: {1}]
  %5 = xla_tuple %s3, %s4
  %s6 = sld [smem:[#allocation0]]
  $region61: #{tpu_custom_call.1} parent=0
    _
  %s8 = ssub.s32 1, %s6
  %s9 = scalar_select 0, %s8, %s6
  $region1: #{tpu_custom_call.1} parent=0
    #allocation2 [shape = 'u8[131072]{0}', space=vmem, size = 0x20000, scoped, tag = 'input window, operand 0']
    #allocation3 [shape = 's32[2]{0}', space=sflag, size = 0x8, scoped, tag = 'scoped memory for tpu_custom_call.1']
    #allocation4 [shape = 's32[2]{0}', space=sflag, size = 0x8, scoped, tag = 'scoped memory for tpu_custom_call.1']
    #allocation5 [shape = 'u8[32768]{0}', space=vmem, size = 0x8000, scoped, tag = 'input window, operand 1, single buffered']
    #allocation6 [shape = 's32[1]{0}', space=sflag, size = 0x4, scoped, tag = 'scoped memory for tpu_custom_call.1']
    #allocation7 [shape = 'u8[131072]{0}', space=vmem, size = 0x20000, scoped, tag = 'output window, operand 0']
    #allocation8 [shape = 'u8[2048]{0}', space=vmem, size = 0x800, scoped, tag = 'output window, operand 1']
    #allocation9 [shape = 's32[2]{0}', space=sflag, size = 0x8, scoped, tag = 'scoped memory for tpu_custom_call.1']
    %10 = vsyncpa [#allocation3], 0
    %s11 = scalar_lea.sflag [#allocation3], 1
    %12 = vsyncpa %s11, 0
    %13 = vsyncpa [#allocation6], 0
    %14 = vsyncpa [#allocation4], 0
    %s15 = scalar_lea.sflag [#allocation4], 1
    %16 = vsyncpa %s15, 0
    %17 = vsyncpa [#allocation9], 0
    %s18 = scalar_lea.sflag [#allocation9], 1
    %19 = vsyncpa %s18, 0
    loop: start=0, step=1, limit=4
    $region2: #{tpu_custom_call.1} parent=1 // loop_pre_header
      _
    $region3: #{tpu_custom_call.1} parent=1 // loop_header
      %s21 = sphi 0, %s25
      %p22 = scmp.ge.s32.totalorder %s21, 4
      %s31 = sphi 0, %s33
      %s34 = sphi 0, %s31
      %s35 = sphi 0, %s34
      %s51 = sphi 0, %s35
      %s55 = sphi 0, %s55
      %s57 = sphi 0, %s55
      %s58 = sphi 0, %s57
      %s72 = sphi 0, %s58
      %s76 = sphi 0, %s76
      %s78 = sphi 0, %s76
      %s79 = sphi 0, %s78
      %s93 = sphi 0, %s79
      %s99 = sphi 0, %s101
      %s102 = sphi 0, %s99
      %s103 = sphi 0, %s102
      %s119 = sphi 0, %s103
      %s125 = sphi 0, %s127
      %s128 = sphi 0, %s125
      %s129 = sphi 0, %s128
      %s145 = sphi 0, %s129
    $region4: #{tpu_custom_call.1} parent=1 // loop_header_branch
      %24 = sbr.rel (%p22) target = $region8
    $region5: #{tpu_custom_call.1} parent=1 // loop_body
      %s26 = ssub.s32 %s21, 1
      %s27 = ssub.s32 %s21, 2
      %s28 = sadd.s32 %s21, 1
      %s29 = ssub.s32 %s21, %s28
      %p30 = scmp.eq.s32.totalorder %s29, 0
      %s32 = sadd.s32 %s31, 1
      %s33 = scalar_select %p30, %s31, %s32
      %p36 = pneg %p30
      %p37 = scmp.eq.s32.totalorder %s21, 1
      %p38 = por %p36, %p37
      %p39 = scmp.ne.s32.totalorder %s31, %s34
      %p40 = scmp.eq.s32.totalorder %s21, 0
      %p41 = por %p39, %p40
      %p42 = scmp.ne.s32.totalorder %s31, %s34
      %p43 = scmp.eq.s32.totalorder %s26, 1
      %p44 = por %p42, %p43
      %p45 = scmp.ne.s32.totalorder %s34, %s35
      %p46 = scmp.eq.s32.totalorder %s26, 0
      %p47 = por %p45, %p46
      %p48 = scmp.ne.s32.totalorder %s34, %s35
      %p49 = scmp.eq.s32.totalorder %s27, 1
      %p50 = por %p48, %p49
      %p52 = scmp.ne.s32.totalorder %s35, %s51
      %p53 = scmp.eq.s32.totalorder %s27, 0
      %p54 = por %p52, %p53
      %s56 = sadd.s32 %s55, 1
      %p59 = scmp.eq.s32.totalorder %s21, 1
      %p60 = scmp.ne.s32.totalorder %s55, %s57
      %p61 = scmp.eq.s32.totalorder %s21, 0
      %p62 = por %p60, %p61
      %p63 = scmp.ne.s32.totalorder %s55, %s57
      %p64 = scmp.eq.s32.totalorder %s26, 1
      %p65 = por %p63, %p64
      %p66 = scmp.ne.s32.totalorder %s57, %s58
      %p67 = scmp.eq.s32.totalorder %s26, 0
      %p68 = por %p66, %p67
      %p69 = scmp.ne.s32.totalorder %s57, %s58
      %p70 = scmp.eq.s32.totalorder %s27, 1
      %p71 = por %p69, %p70
      %p73 = scmp.ne.s32.totalorder %s58, %s72
      %p74 = scmp.eq.s32.totalorder %s27, 0
      %p75 = por %p73, %p74
      %s77 = sadd.s32 %s76, 1
      %p80 = scmp.eq.s32.totalorder %s21, 1
      %p81 = scmp.ne.s32.totalorder %s76, %s78
      %p82 = scmp.eq.s32.totalorder %s21, 0
      %p83 = por %p81, %p82
      %p84 = scmp.ne.s32.totalorder %s76, %s78
      %p85 = scmp.eq.s32.totalorder %s26, 1
      %p86 = por %p84, %p85
      %p87 = scmp.ne.s32.totalorder %s78, %s79
      %p88 = scmp.eq.s32.totalorder %s26, 0
      %p89 = por %p87, %p88
      %p90 = scmp.ne.s32.totalorder %s78, %s79
      %p91 = scmp.eq.s32.totalorder %s27, 1
      %p92 = por %p90, %p91
      %p94 = scmp.ne.s32.totalorder %s79, %s93
      %p95 = scmp.eq.s32.totalorder %s27, 0
      %p96 = por %p94, %p95
      %s97 = ssub.s32 %s21, %s28
      %p98 = scmp.eq.s32.totalorder %s97, 0
      %s100 = sadd.s32 %s99, 1
      %s101 = scalar_select %p98, %s99, %s100
      %p104 = pneg %p98
      %p105 = scmp.eq.s32.totalorder %s21, 1
      %p106 = por %p104, %p105
      %p107 = scmp.ne.s32.totalorder %s99, %s102
      %p108 = scmp.eq.s32.totalorder %s21, 0
      %p109 = por %p107, %p108
      %p110 = scmp.ne.s32.totalorder %s99, %s102
      %p111 = scmp.eq.s32.totalorder %s26, 1
      %p112 = por %p110, %p111
      %p113 = scmp.ne.s32.totalorder %s102, %s103
      %p114 = scmp.eq.s32.totalorder %s26, 0
      %p115 = por %p113, %p114
      %p116 = scmp.ne.s32.totalorder %s102, %s103
      %p117 = scmp.eq.s32.totalorder %s27, 1
      %p118 = por %p116, %p117
      %p120 = scmp.ne.s32.totalorder %s103, %s119
      %p121 = scmp.eq.s32.totalorder %s27, 0
      %p122 = por %p120, %p121
      %s123 = ssub.s32 %s21, %s28
      %p124 = scmp.eq.s32.totalorder %s123, 0
      %s126 = sadd.s32 %s125, 1
      %s127 = scalar_select %p124, %s125, %s126
      %p130 = pneg %p124
      %p131 = scmp.eq.s32.totalorder %s21, 1
      %p132 = por %p130, %p131
      %p133 = scmp.ne.s32.totalorder %s125, %s128
      %p134 = scmp.eq.s32.totalorder %s21, 0
      %p135 = por %p133, %p134
      %p136 = scmp.ne.s32.totalorder %s125, %s128
      %p137 = scmp.eq.s32.totalorder %s26, 1
      %p138 = por %p136, %p137
      %p139 = scmp.ne.s32.totalorder %s128, %s129
      %p140 = scmp.eq.s32.totalorder %s26, 0
      %p141 = por %p139, %p140
      %p142 = scmp.ne.s32.totalorder %s128, %s129
      %p143 = scmp.eq.s32.totalorder %s27, 1
      %p144 = por %p142, %p143
      %p146 = scmp.ne.s32.totalorder %s129, %s145
      %p147 = scmp.eq.s32.totalorder %s27, 0
      %p148 = por %p146, %p147
      %p149 = scmp.le.s32.totalorder 1, %s21
      %p150 = scmp.lt.s32.totalorder %s21, 3
      %p151 = pnand %p149, %p150
      %p152 = pneg %p151
      // Predicated region
      $region9: #{tpu_custom_call.1} parent=5 // pred_check
        _
      $region10: #{tpu_custom_call.1} parent=5 // pred_check_branch
        %154 = sbr.rel (%p151) target = $region12
      $region11: #{tpu_custom_call.1} parent=5 // pred_region
        %s155 = ssub.s32 %s21, 1
        // Predicated region
        $region13: #{tpu_custom_call.1} parent=11 // pred_check
          %p156 = pneg %p68
        $region14: #{tpu_custom_call.1} parent=11 // pred_check_branch
          %158 = sbr.rel (%p156) target = $region16
        $region15: #{tpu_custom_call.1} parent=11 // pred_region
          %s160 = ssub.s32 1024, 1024
          %161 = vsyncadd [#allocation6], %s160
          %s162 = sshll.u32 [#allocation5], 4
          %s163 = int_to_ptr.vmem [resolvable:$true] %s162
          %168 = dma.hbm_to_vmem [thread:$0]  %s1, 1024, %s163, [#allocation6], 64, 64, 4
        $region16: #{tpu_custom_call.1} parent=11 // pred_fallthru
          _
        // Predicated region
        $region17: #{tpu_custom_call.1} parent=11 // pred_check
          %p169 = pneg %p89
        $region18: #{tpu_custom_call.1} parent=11 // pred_check_branch
          %171 = sbr.rel (%p169) target = $region20
        $region19: #{tpu_custom_call.1} parent=11 // pred_region
          _
        $region20: #{tpu_custom_call.1} parent=11 // pred_fallthru
          _
      $region12: #{tpu_custom_call.1} parent=5 // pred_fallthru
        _
      %p172 = scmp.lt.s32.totalorder %s21, 2
      // Predicated region
      $region21: #{tpu_custom_call.1} parent=5 // pred_check
        %p173 = pneg %p172
      $region22: #{tpu_custom_call.1} parent=5 // pred_check_branch
        %175 = sbr.rel (%p173) target = $region24
      $region23: #{tpu_custom_call.1} parent=5 // pred_region
        // Predicated region
        $region25: #{tpu_custom_call.1} parent=23 // pred_check
          %p176 = pneg %p41
        $region26: #{tpu_custom_call.1} parent=23 // pred_check_branch
          %178 = sbr.rel (%p176) target = $region28
        $region27: #{tpu_custom_call.1} parent=23 // pred_region
          %s179 = sand.u32 %s31, 1
          %s180 = scalar_lea.sflag [#allocation3], %s179
          %s181 = sand.u32 %s31, 1
          %s182 = smul.addr %s181, 128
          %s183 = scalar_lea.vmem [#allocation2], %s182
          %s185 = ssub.s32 2048, 2048
          %186 = vsyncadd %s180, %s185
          %s187 = smul.addr %s21, 32
          %s188 = smul.addr %s187, 64
          %s189 = scalar_lea.hbm %s0, %s188
          %s190 = sshll.u32 %s183, 4
          %s191 = int_to_ptr.vmem [resolvable:$true] %s190
          %196 = dma.hbm_to_vmem [thread:$0]  %s189, 2048, %s191, %s180, 64, 64, 4
        $region28: #{tpu_custom_call.1} parent=23 // pred_fallthru
          _
      $region24: #{tpu_custom_call.1} parent=5 // pred_fallthru
        _
      %p197 = scmp.le.s32.totalorder 1, %s21
      %p198 = scmp.lt.s32.totalorder %s21, 3
      %p199 = pnand %p197, %p198
      %p200 = pneg %p199
      // Predicated region
      $region29: #{tpu_custom_call.1} parent=5 // pred_check
        _
      $region30: #{tpu_custom_call.1} parent=5 // pred_check_branch
        %202 = sbr.rel (%p199) target = $region32
      $region31: #{tpu_custom_call.1} parent=5 // pred_region
        %s203 = ssub.s32 %s21, 1
        %s204 = sand.u32 %s34, 1
        %s205 = scalar_lea.sflag [#allocation3], %s204
        %s206 = sand.u32 %s34, 1
        %s207 = smul.addr %s206, 128
        %s208 = scalar_lea.vmem [#allocation2], %s207
        // Predicated region
        $region33: #{tpu_custom_call.1} parent=31 // pred_check
          %p209 = pneg %p47
        $region34: #{tpu_custom_call.1} parent=31 // pred_check_branch
          %211 = sbr.rel (%p209) target = $region36
        $region35: #{tpu_custom_call.1} parent=31 // pred_region
          %212 = dma.done %s205, 2048
        $region36: #{tpu_custom_call.1} parent=31 // pred_fallthru
          _
        // Predicated region
        $region37: #{tpu_custom_call.1} parent=31 // pred_check
          %p213 = pneg %p68
        $region38: #{tpu_custom_call.1} parent=31 // pred_check_branch
          %215 = sbr.rel (%p213) target = $region40
        $region39: #{tpu_custom_call.1} parent=31 // pred_region
          %216 = dma.done [#allocation6], 1024
        $region40: #{tpu_custom_call.1} parent=31 // pred_fallthru
          _
        %s217 = sand.u32 %s34, 1
        %s218 = scalar_lea.sflag [#allocation3], %s217
        %s219 = sand.u32 %s34, 1
        %s220 = smul.addr %s219, 128
        %s221 = scalar_lea.vmem [#allocation2], %s220
        %p222 = pneg %p47
        %p223 = pneg %p44
        %p224 = pneg %p68
        %p225 = pneg %p65
        %p226 = pneg %p89
        %p227 = pneg %p86
        %p228 = pneg %p115
        %p229 = pneg %p112
        %s230 = sand.u32 %s102, 1
        %s231 = scalar_lea.sflag [#allocation4], %s230
        %s232 = sand.u32 %s102, 1
        %s233 = smul.addr %s232, 128
        %s234 = scalar_lea.vmem [#allocation7], %s233
        %p235 = pneg %p141
        %p236 = pneg %p138
        %s237 = sand.u32 %s128, 1
        %s238 = scalar_lea.sflag [#allocation9], %s237
        %s239 = sand.u32 %s128, 1
        %s240 = smul.addr %s239, 2
        %s241 = scalar_lea.vmem [#allocation8], %s240
        %v243 = vld [vmem:[%s208] sm:$0xf]
        %v244 = vld [vmem:[%s208 + $0x4] sm:$0xf]
        %v245 = vld [vmem:[%s208 + $0x8] sm:$0xf]
        %v246 = vld [vmem:[%s208 + $0xc] sm:$0xf]
        %v247 = vld [vmem:[%s208 + $0x10] sm:$0xf]
        %v248 = vld [vmem:[%s208 + $0x14] sm:$0xf]
        %v249 = vld [vmem:[%s208 + $0x18] sm:$0xf]
        %v250 = vld [vmem:[%s208 + $0x1c] sm:$0xf]
        %v251 = vld [vmem:[%s208 + $0x20] sm:$0xf]
        %v252 = vld [vmem:[%s208 + $0x24] sm:$0xf]
        %v253 = vld [vmem:[%s208 + $0x28] sm:$0xf]
        %v254 = vld [vmem:[%s208 + $0x2c] sm:$0xf]
        %v255 = vld [vmem:[%s208 + $0x30] sm:$0xf]
        %v256 = vld [vmem:[%s208 + $0x34] sm:$0xf]
        %v257 = vld [vmem:[%s208 + $0x38] sm:$0xf]
        %v258 = vld [vmem:[%s208 + $0x3c] sm:$0xf]
        %v259 = vld [vmem:[%s208 + $0x40] sm:$0xf]
        %v260 = vld [vmem:[%s208 + $0x44] sm:$0xf]
        %v261 = vld [vmem:[%s208 + $0x48] sm:$0xf]
        %v262 = vld [vmem:[%s208 + $0x4c] sm:$0xf]
        %v263 = vld [vmem:[%s208 + $0x50] sm:$0xf]
        %v264 = vld [vmem:[%s208 + $0x54] sm:$0xf]
        %v265 = vld [vmem:[%s208 + $0x58] sm:$0xf]
        %v266 = vld [vmem:[%s208 + $0x5c] sm:$0xf]
        %v267 = vld [vmem:[%s208 + $0x60] sm:$0xf]
        %v268 = vld [vmem:[%s208 + $0x64] sm:$0xf]
        %v269 = vld [vmem:[%s208 + $0x68] sm:$0xf]
        %v270 = vld [vmem:[%s208 + $0x6c] sm:$0xf]
        %v271 = vld [vmem:[%s208 + $0x70] sm:$0xf]
        %v272 = vld [vmem:[%s208 + $0x74] sm:$0xf]
        %v273 = vld [vmem:[%s208 + $0x78] sm:$0xf]
        %v274 = vld [vmem:[%s208 + $0x7c] sm:$0xf]
        %v275 = vld [vmem:[#allocation5] sm:$0xf]
        %v276 = vld [vmem:[#allocation5 + $0x4] sm:$0xf]
        %v277 = vld [vmem:[#allocation5 + $0x8] sm:$0xf]
        %v278 = vld [vmem:[#allocation5 + $0xc] sm:$0xf]
        %v279 = vld [vmem:[#allocation5 + $0x10] sm:$0xf]
        %v280 = vld [vmem:[#allocation5 + $0x14] sm:$0xf]
        %v281 = vld [vmem:[#allocation5 + $0x18] sm:$0xf]
        %v282 = vld [vmem:[#allocation5 + $0x1c] sm:$0xf]
        %v283 = vld [vmem:[#allocation5 + $0x20] sm:$0xf]
        %v284 = vld [vmem:[#allocation5 + $0x24] sm:$0xf]
        %v285 = vld [vmem:[#allocation5 + $0x28] sm:$0xf]
        %v286 = vld [vmem:[#allocation5 + $0x2c] sm:$0xf]
        %v287 = vld [vmem:[#allocation5 + $0x30] sm:$0xf]
        %v288 = vld [vmem:[#allocation5 + $0x34] sm:$0xf]
        %v289 = vld [vmem:[#allocation5 + $0x38] sm:$0xf]
        %v290 = vld [vmem:[#allocation5 + $0x3c] sm:$0xf]
        %v291 = vld [vmem:[%s2] sm:$0x1]
        %v293 = vlaneseq
        %v294 = vshrl.u32 %v293, 7
        %v295 = vsub.s32 0, %v294
        %v296 = vrot.slane %v291, %v295
        %v330 = vunpack.c.l.b16 %v243
        %v331 = vunpack.c.l.b16 %v244
        %v332 = vunpack.c.l.b16 %v245
        %v333 = vunpack.c.l.b16 %v246
        %v334 = vunpack.c.l.b16 %v247
        %v335 = vunpack.c.l.b16 %v248
        %v336 = vunpack.c.l.b16 %v249
        %v337 = vunpack.c.l.b16 %v250
        %v338 = vunpack.c.l.b16 %v251
        %v339 = vunpack.c.l.b16 %v252
        %v340 = vunpack.c.l.b16 %v253
        %v341 = vunpack.c.l.b16 %v254
        %v342 = vunpack.c.l.b16 %v255
        %v343 = vunpack.c.l.b16 %v256
        %v344 = vunpack.c.l.b16 %v257
        %v345 = vunpack.c.l.b16 %v258
        %v346 = vunpack.c.l.b16 %v259
        %v347 = vunpack.c.l.b16 %v260
        %v348 = vunpack.c.l.b16 %v261
        %v349 = vunpack.c.l.b16 %v262
        %v350 = vunpack.c.l.b16 %v263
        %v351 = vunpack.c.l.b16 %v264
        %v352 = vunpack.c.l.b16 %v265
        %v353 = vunpack.c.l.b16 %v266
        %v354 = vunpack.c.l.b16 %v267
        %v355 = vunpack.c.l.b16 %v268
        %v356 = vunpack.c.l.b16 %v269
        %v357 = vunpack.c.l.b16 %v270
        %v358 = vunpack.c.l.b16 %v271
        %v359 = vunpack.c.l.b16 %v272
        %v360 = vunpack.c.l.b16 %v273
        %v361 = vunpack.c.l.b16 %v274
        %v362 = vpack.c.b16 %v331, %v330
        %v363 = vpack.c.b16 %v333, %v332
        %v364 = vpack.c.b16 %v335, %v334
        %v365 = vpack.c.b16 %v337, %v336
        %v366 = vpack.c.b16 %v339, %v338
        %v367 = vpack.c.b16 %v341, %v340
        %v368 = vpack.c.b16 %v343, %v342
        %v369 = vpack.c.b16 %v345, %v344
        %v370 = vpack.c.b16 %v347, %v346
        %v371 = vpack.c.b16 %v349, %v348
        %v372 = vpack.c.b16 %v351, %v350
        %v373 = vpack.c.b16 %v353, %v352
        %v374 = vpack.c.b16 %v355, %v354
        %v375 = vpack.c.b16 %v357, %v356
        %v376 = vpack.c.b16 %v359, %v358
        %v377 = vpack.c.b16 %v361, %v360
        %v410 = vunpack.c.l.b16 %v275
        %v411 = vunpack.c.l.b16 %v276
        %v412 = vunpack.c.l.b16 %v277
        %v413 = vunpack.c.l.b16 %v278
        %v414 = vunpack.c.l.b16 %v279
        %v415 = vunpack.c.l.b16 %v280
        %v416 = vunpack.c.l.b16 %v281
        %v417 = vunpack.c.l.b16 %v282
        %v418 = vunpack.c.l.b16 %v283
        %v419 = vunpack.c.l.b16 %v284
        %v420 = vunpack.c.l.b16 %v285
        %v421 = vunpack.c.l.b16 %v286
        %v422 = vunpack.c.l.b16 %v287
        %v423 = vunpack.c.l.b16 %v288
        %v424 = vunpack.c.l.b16 %v289
        %v425 = vunpack.c.l.b16 %v290
        %v426 = vpack.c.b16 %v411, %v410
        %v427 = vpack.c.b16 %v413, %v412
        %v428 = vpack.c.b16 %v415, %v414
        %v429 = vpack.c.b16 %v417, %v416
        %v430 = vpack.c.b16 %v419, %v418
        %v431 = vpack.c.b16 %v421, %v420
        %v432 = vpack.c.b16 %v423, %v422
        %v433 = vpack.c.b16 %v425, %v424
        %442 = vmatprep.subr.bf16.mxu0 0
        %443 = vmatpush1.bf16.msra.mxu0 %v426
        %444 = vmatprep.subr.bf16.mxu0 0
        %445 = vmatpush1.bf16.msra.mxu0 %v427
        %446 = vmatprep.subr.bf16.mxu0 0
        %447 = vmatpush1.bf16.msra.mxu0 %v428
        %448 = vmatprep.subr.bf16.mxu0 0
        %449 = vmatpush1.bf16.msra.mxu0 %v429
        %450 = vmatprep.subr.bf16.mxu0 0
        %451 = vmatpush1.bf16.msra.mxu0 %v430
        %452 = vmatprep.subr.bf16.mxu0 0
        %453 = vmatpush1.bf16.msra.mxu0 %v431
        %454 = vmatprep.subr.bf16.mxu0 0
        %455 = vmatpush1.bf16.msra.mxu0 %v432
        %456 = vmatprep.subr.bf16.mxu0 0
        %457 = vmatpush1.bf16.msra.mxu0 %v433
        %458 = vmatprep.subr.bf16.mxu0 0
        %459 = vmatpush1.bf16.msra.mxu0 0
        %460 = vmatprep.subr.bf16.mxu0 0
        %461 = vmatpush1.bf16.msra.mxu0 0
        %462 = vmatprep.subr.bf16.mxu0 0
        %463 = vmatpush1.bf16.msra.mxu0 0
        %464 = vmatprep.subr.bf16.mxu0 0
        %465 = vmatpush1.bf16.msra.mxu0 0
        %466 = vmatprep.subr.bf16.mxu0 0
        %467 = vmatpush1.bf16.msra.mxu0 0
        %468 = vmatprep.subr.bf16.mxu0 0
        %469 = vmatpush1.bf16.msra.mxu0 0
        %470 = vmatprep.subr.bf16.mxu0 0
        %471 = vmatpush1.bf16.msra.mxu0 0
        %472 = vmatprep.subr.bf16.mxu0 0
        %473 = vmatpush1.bf16.msra.mxu0 0
        %474 = vmatprep.mubr.bf16.mxu0 0
        %475 = vmatmul.mubr.bf16.gmra.mrb[0].mxu0 %v362
        %v476 = vpop.f32.mrb[0].mxu0
        %v477 = vadd.f32 %v296, %v476
        %v478 = vpop.f32.mrb[0].mxu0
        %v479 = vpop.f32.mrb[0].mxu0
        %v480 = vadd.f32 %v296, %v479
        %v481 = vpop.f32.mrb[0].mxu0
        %482 = vmatprep.mubr.bf16.mxu0 0
        %483 = vmatmul.mubr.bf16.gmra.mrb[0].mxu0 %v363
        %v484 = vpop.f32.mrb[0].mxu0
        %v485 = vadd.f32 %v296, %v484
        %v486 = vpop.f32.mrb[0].mxu0
        %v487 = vpop.f32.mrb[0].mxu0
        %v488 = vadd.f32 %v296, %v487
        %v489 = vpop.f32.mrb[0].mxu0
        %490 = vmatprep.mubr.bf16.mxu0 0
        %491 = vmatmul.mubr.bf16.gmra.mrb[0].mxu0 %v364
        %v492 = vpop.f32.mrb[0].mxu0
        %v493 = vadd.f32 %v296, %v492
        %v494 = vpop.f32.mrb[0].mxu0
        %v495 = vpop.f32.mrb[0].mxu0
        %v496 = vadd.f32 %v296, %v495
        %v497 = vpop.f32.mrb[0].mxu0
        %498 = vmatprep.mubr.bf16.mxu0 0
        %499 = vmatmul.mubr.bf16.gmra.mrb[0].mxu0 %v365
        %v500 = vpop.f32.mrb[0].mxu0
        %v501 = vadd.f32 %v296, %v500
        %v502 = vpop.f32.mrb[0].mxu0
        %v503 = vpop.f32.mrb[0].mxu0
        %v504 = vadd.f32 %v296, %v503
        %v505 = vpop.f32.mrb[0].mxu0
        %506 = vmatprep.mubr.bf16.mxu0 0
        %507 = vmatmul.mubr.bf16.gmra.mrb[0].mxu0 %v366
        %v508 = vpop.f32.mrb[0].mxu0
        %v509 = vadd.f32 %v296, %v508
        %v510 = vpop.f32.mrb[0].mxu0
        %v511 = vpop.f32.mrb[0].mxu0
        %v512 = vadd.f32 %v296, %v511
        %v513 = vpop.f32.mrb[0].mxu0
        %514 = vmatprep.mubr.bf16.mxu0 0
        %515 = vmatmul.mubr.bf16.gmra.mrb[0].mxu0 %v367
        %v516 = vpop.f32.mrb[0].mxu0
        %v517 = vadd.f32 %v296, %v516
        %v518 = vpop.f32.mrb[0].mxu0
        %v519 = vpop.f32.mrb[0].mxu0
        %v520 = vadd.f32 %v296, %v519
        %v521 = vpop.f32.mrb[0].mxu0
        %522 = vmatprep.mubr.bf16.mxu0 0
        %523 = vmatmul.mubr.bf16.gmra.mrb[0].mxu0 %v368
        %v524 = vpop.f32.mrb[0].mxu0
        %v525 = vadd.f32 %v296, %v524
        %v526 = vpop.f32.mrb[0].mxu0
        %v527 = vpop.f32.mrb[0].mxu0
        %v528 = vadd.f32 %v296, %v527
        %v529 = vpop.f32.mrb[0].mxu0
        %530 = vmatprep.mubr.bf16.mxu0 0
        %531 = vmatmul.mubr.bf16.gmra.mrb[0].mxu0 %v369
        %v532 = vpop.f32.mrb[0].mxu0
        %v533 = vadd.f32 %v296, %v532
        %v534 = vpop.f32.mrb[0].mxu0
        %v535 = vpop.f32.mrb[0].mxu0
        %v536 = vadd.f32 %v296, %v535
        %v537 = vpop.f32.mrb[0].mxu0
        %538 = vmatprep.mubr.bf16.mxu0 0
        %539 = vmatmul.mubr.bf16.gmra.mrb[0].mxu0 %v370
        %v540 = vpop.f32.mrb[0].mxu0
        %v541 = vadd.f32 %v296, %v540
        %v542 = vpop.f32.mrb[0].mxu0
        %v543 = vpop.f32.mrb[0].mxu0
        %v544 = vadd.f32 %v296, %v543
        %v545 = vpop.f32.mrb[0].mxu0
        %546 = vmatprep.mubr.bf16.mxu0 0
        %547 = vmatmul.mubr.bf16.gmra.mrb[0].mxu0 %v371
        %v548 = vpop.f32.mrb[0].mxu0
        %v549 = vadd.f32 %v296, %v548
        %v550 = vpop.f32.mrb[0].mxu0
        %v551 = vpop.f32.mrb[0].mxu0
        %v552 = vadd.f32 %v296, %v551
        %v553 = vpop.f32.mrb[0].mxu0
        %554 = vmatprep.mubr.bf16.mxu0 0
        %555 = vmatmul.mubr.bf16.gmra.mrb[0].mxu0 %v372
        %v556 = vpop.f32.mrb[0].mxu0
        %v557 = vadd.f32 %v296, %v556
        %v558 = vpop.f32.mrb[0].mxu0
        %v559 = vpop.f32.mrb[0].mxu0
        %v560 = vadd.f32 %v296, %v559
        %v561 = vpop.f32.mrb[0].mxu0
        %562 = vmatprep.mubr.bf16.mxu0 0
        %563 = vmatmul.mubr.bf16.gmra.mrb[0].mxu0 %v373
        %v564 = vpop.f32.mrb[0].mxu0
        %v565 = vadd.f32 %v296, %v564
        %v566 = vpop.f32.mrb[0].mxu0
        %v567 = vpop.f32.mrb[0].mxu0
        %v568 = vadd.f32 %v296, %v567
        %v569 = vpop.f32.mrb[0].mxu0
        %570 = vmatprep.mubr.bf16.mxu0 0
        %571 = vmatmul.mubr.bf16.gmra.mrb[0].mxu0 %v374
        %v572 = vpop.f32.mrb[0].mxu0
        %v573 = vadd.f32 %v296, %v572
        %v574 = vpop.f32.mrb[0].mxu0
        %v575 = vpop.f32.mrb[0].mxu0
        %v576 = vadd.f32 %v296, %v575
        %v577 = vpop.f32.mrb[0].mxu0
        %578 = vmatprep.mubr.bf16.mxu0 0
        %579 = vmatmul.mubr.bf16.gmra.mrb[0].mxu0 %v375
        %v580 = vpop.f32.mrb[0].mxu0
        %v581 = vadd.f32 %v296, %v580
        %v582 = vpop.f32.mrb[0].mxu0
        %v583 = vpop.f32.mrb[0].mxu0
        %v584 = vadd.f32 %v296, %v583
        %v585 = vpop.f32.mrb[0].mxu0
        %586 = vmatprep.mubr.bf16.mxu0 0
        %587 = vmatmul.mubr.bf16.gmra.mrb[0].mxu0 %v376
        %v588 = vpop.f32.mrb[0].mxu0
        %v589 = vadd.f32 %v296, %v588
        %v590 = vpop.f32.mrb[0].mxu0
        %v591 = vpop.f32.mrb[0].mxu0
        %v592 = vadd.f32 %v296, %v591
        %v593 = vpop.f32.mrb[0].mxu0
        %594 = vmatprep.mubr.bf16.mxu0 0
        %595 = vmatmul.mubr.bf16.gmra.mrb[0].mxu0 %v377
        %v596 = vpop.f32.mrb[0].mxu0
        %v597 = vadd.f32 %v296, %v596
        %v598 = vpop.f32.mrb[0].mxu0
        %v599 = vpop.f32.mrb[0].mxu0
        %v600 = vadd.f32 %v296, %v599
        %v601 = vpop.f32.mrb[0].mxu0
        %602 = vdwg.mxu0
        %v603 = vpack.c.bf16 %v480, %v477
        %v604 = vpack.c.bf16 %v488, %v485
        %v605 = vpack.c.bf16 %v496, %v493
        %v606 = vpack.c.bf16 %v504, %v501
        %v607 = vpack.c.bf16 %v512, %v509
        %v608 = vpack.c.bf16 %v520, %v517
        %v609 = vpack.c.bf16 %v528, %v525
        %v610 = vpack.c.bf16 %v536, %v533
        %v611 = vpack.c.bf16 %v544, %v541
        %v612 = vpack.c.bf16 %v552, %v549
        %v613 = vpack.c.bf16 %v560, %v557
        %v614 = vpack.c.bf16 %v568, %v565
        %v615 = vpack.c.bf16 %v576, %v573
        %v616 = vpack.c.bf16 %v584, %v581
        %v617 = vpack.c.bf16 %v592, %v589
        %v618 = vpack.c.bf16 %v600, %v597
        %v635 = vunpack.c.l.b16 %v603
        %v636 = vunpack.c.h.b16 %v603
        %v637 = vunpack.c.l.b16 %v604
        %v638 = vunpack.c.h.b16 %v604
        %v639 = vunpack.c.l.b16 %v605
        %v640 = vunpack.c.h.b16 %v605
        %v641 = vunpack.c.l.b16 %v606
        %v642 = vunpack.c.h.b16 %v606
        %v643 = vunpack.c.l.b16 %v607
        %v644 = vunpack.c.h.b16 %v607
        %v645 = vunpack.c.l.b16 %v608
        %v646 = vunpack.c.h.b16 %v608
        %v647 = vunpack.c.l.b16 %v609
        %v648 = vunpack.c.h.b16 %v609
        %v649 = vunpack.c.l.b16 %v610
        %v650 = vunpack.c.h.b16 %v610
        %v651 = vunpack.c.l.b16 %v611
        %v652 = vunpack.c.h.b16 %v611
        %v653 = vunpack.c.l.b16 %v612
        %v654 = vunpack.c.h.b16 %v612
        %v655 = vunpack.c.l.b16 %v613
        %v656 = vunpack.c.h.b16 %v613
        %v657 = vunpack.c.l.b16 %v614
        %v658 = vunpack.c.h.b16 %v614
        %v659 = vunpack.c.l.b16 %v615
        %v660 = vunpack.c.h.b16 %v615
        %v661 = vunpack.c.l.b16 %v616
        %v662 = vunpack.c.h.b16 %v616
        %v663 = vunpack.c.l.b16 %v617
        %v664 = vunpack.c.h.b16 %v617
        %v665 = vunpack.c.l.b16 %v618
        %v666 = vunpack.c.h.b16 %v618
        %v667 = vpack.c.b16 %v635, %v635
        %v668 = vpack.c.b16 %v636, %v636
        %v669 = vpack.c.b16 %v637, %v637
        %v670 = vpack.c.b16 %v638, %v638
        %v671 = vpack.c.b16 %v639, %v639
        %v672 = vpack.c.b16 %v640, %v640
        %v673 = vpack.c.b16 %v641, %v641
        %v674 = vpack.c.b16 %v642, %v642
        %v675 = vpack.c.b16 %v643, %v643
        %v676 = vpack.c.b16 %v644, %v644
        %v677 = vpack.c.b16 %v645, %v645
        %v678 = vpack.c.b16 %v646, %v646
        %v679 = vpack.c.b16 %v647, %v647
        %v680 = vpack.c.b16 %v648, %v648
        %v681 = vpack.c.b16 %v649, %v649
        %v682 = vpack.c.b16 %v650, %v650
        %v683 = vpack.c.b16 %v651, %v651
        %v684 = vpack.c.b16 %v652, %v652
        %v685 = vpack.c.b16 %v653, %v653
        %v686 = vpack.c.b16 %v654, %v654
        %v687 = vpack.c.b16 %v655, %v655
        %v688 = vpack.c.b16 %v656, %v656
        %v689 = vpack.c.b16 %v657, %v657
        %v690 = vpack.c.b16 %v658, %v658
        %v691 = vpack.c.b16 %v659, %v659
        %v692 = vpack.c.b16 %v660, %v660
        %v693 = vpack.c.b16 %v661, %v661
        %v694 = vpack.c.b16 %v662, %v662
        %v695 = vpack.c.b16 %v663, %v663
        %v696 = vpack.c.b16 %v664, %v664
        %v697 = vpack.c.b16 %v665, %v665
        %v698 = vpack.c.b16 %v666, %v666
        %731 = vst [vmem:[%s234] sm:$0xf] %v667
        %732 = vst [vmem:[%s234 + $0x4] sm:$0xf] %v668
        %733 = vst [vmem:[%s234 + $0x8] sm:$0xf] %v669
        %734 = vst [vmem:[%s234 + $0xc] sm:$0xf] %v670
        %735 = vst [vmem:[%s234 + $0x10] sm:$0xf] %v671
        %736 = vst [vmem:[%s234 + $0x14] sm:$0xf] %v672
        %737 = vst [vmem:[%s234 + $0x18] sm:$0xf] %v673
        %738 = vst [vmem:[%s234 + $0x1c] sm:$0xf] %v674
        %739 = vst [vmem:[%s234 + $0x20] sm:$0xf] %v675
        %740 = vst [vmem:[%s234 + $0x24] sm:$0xf] %v676
        %741 = vst [vmem:[%s234 + $0x28] sm:$0xf] %v677
        %742 = vst [vmem:[%s234 + $0x2c] sm:$0xf] %v678
        %743 = vst [vmem:[%s234 + $0x30] sm:$0xf] %v679
        %744 = vst [vmem:[%s234 + $0x34] sm:$0xf] %v680
        %745 = vst [vmem:[%s234 + $0x38] sm:$0xf] %v681
        %746 = vst [vmem:[%s234 + $0x3c] sm:$0xf] %v682
        %747 = vst [vmem:[%s234 + $0x40] sm:$0xf] %v683
        %748 = vst [vmem:[%s234 + $0x44] sm:$0xf] %v684
        %749 = vst [vmem:[%s234 + $0x48] sm:$0xf] %v685
        %750 = vst [vmem:[%s234 + $0x4c] sm:$0xf] %v686
        %751 = vst [vmem:[%s234 + $0x50] sm:$0xf] %v687
        %752 = vst [vmem:[%s234 + $0x54] sm:$0xf] %v688
        %753 = vst [vmem:[%s234 + $0x58] sm:$0xf] %v689
        %754 = vst [vmem:[%s234 + $0x5c] sm:$0xf] %v690
        %755 = vst [vmem:[%s234 + $0x60] sm:$0xf] %v691
        %756 = vst [vmem:[%s234 + $0x64] sm:$0xf] %v692
        %757 = vst [vmem:[%s234 + $0x68] sm:$0xf] %v693
        %758 = vst [vmem:[%s234 + $0x6c] sm:$0xf] %v694
        %759 = vst [vmem:[%s234 + $0x70] sm:$0xf] %v695
        %760 = vst [vmem:[%s234 + $0x74] sm:$0xf] %v696
        %761 = vst [vmem:[%s234 + $0x78] sm:$0xf] %v697
        %762 = vst [vmem:[%s234 + $0x7c] sm:$0xf] %v698
        %v763 = vadd.f32 %v477, %v480
        %v764 = vadd.f32 %v763, %v485
        %v765 = vadd.f32 %v764, %v488
        %v766 = vadd.f32 %v765, %v493
        %v767 = vadd.f32 %v766, %v496
        %v768 = vadd.f32 %v767, %v501
        %v769 = vadd.f32 %v768, %v504
        %v770 = vadd.f32 %v769, %v509
        %v771 = vadd.f32 %v770, %v512
        %v772 = vadd.f32 %v771, %v517
        %v773 = vadd.f32 %v772, %v520
        %v774 = vadd.f32 %v773, %v525
        %v775 = vadd.f32 %v774, %v528
        %v776 = vadd.f32 %v775, %v533
        %v777 = vadd.f32 %v776, %v536
        %v778 = vadd.f32 %v777, %v541
        %v779 = vadd.f32 %v778, %v544
        %v780 = vadd.f32 %v779, %v549
        %v781 = vadd.f32 %v780, %v552
        %v782 = vadd.f32 %v781, %v557
        %v783 = vadd.f32 %v782, %v560
        %v784 = vadd.f32 %v783, %v565
        %v785 = vadd.f32 %v784, %v568
        %v786 = vadd.f32 %v785, %v573
        %v787 = vadd.f32 %v786, %v576
        %v788 = vadd.f32 %v787, %v581
        %v789 = vadd.f32 %v788, %v584
        %v790 = vadd.f32 %v789, %v589
        %v791 = vadd.f32 %v790, %v592
        %v792 = vadd.f32 %v791, %v597
        %v793 = vadd.f32 %v792, %v600
        %v794 = vrot.slane %v793, 4
        %v795 = vadd.f32 %v793, %v794
        %v796 = vrot.slane %v795, 2
        %v797 = vadd.f32 %v795, %v796
        %v798 = vrot.slane %v797, 1
        %v799 = vadd.f32 %v797, %v798
        %v800 = vmul.f32 %v477, %v477
        %v801 = vmul.f32 %v480, %v480
        %v802 = vmul.f32 %v485, %v485
        %v803 = vmul.f32 %v488, %v488
        %v804 = vmul.f32 %v493, %v493
        %v805 = vmul.f32 %v496, %v496
        %v806 = vmul.f32 %v501, %v501
        %v807 = vmul.f32 %v504, %v504
        %v808 = vmul.f32 %v509, %v509
        %v809 = vmul.f32 %v512, %v512
        %v810 = vmul.f32 %v517, %v517
        %v811 = vmul.f32 %v520, %v520
        %v812 = vmul.f32 %v525, %v525
        %v813 = vmul.f32 %v528, %v528
        %v814 = vmul.f32 %v533, %v533
        %v815 = vmul.f32 %v536, %v536
        %v816 = vmul.f32 %v541, %v541
        %v817 = vmul.f32 %v544, %v544
        %v818 = vmul.f32 %v549, %v549
        %v819 = vmul.f32 %v552, %v552
        %v820 = vmul.f32 %v557, %v557
        %v821 = vmul.f32 %v560, %v560
        %v822 = vmul.f32 %v565, %v565
        %v823 = vmul.f32 %v568, %v568
        %v824 = vmul.f32 %v573, %v573
        %v825 = vmul.f32 %v576, %v576
        %v826 = vmul.f32 %v581, %v581
        %v827 = vmul.f32 %v584, %v584
        %v828 = vmul.f32 %v589, %v589
        %v829 = vmul.f32 %v592, %v592
        %v830 = vmul.f32 %v597, %v597
        %v831 = vmul.f32 %v600, %v600
        %v832 = vadd.f32 %v800, %v801
        %v833 = vadd.f32 %v832, %v802
        %v834 = vadd.f32 %v833, %v803
        %v835 = vadd.f32 %v834, %v804
        %v836 = vadd.f32 %v835, %v805
        %v837 = vadd.f32 %v836, %v806
        %v838 = vadd.f32 %v837, %v807
        %v839 = vadd.f32 %v838, %v808
        %v840 = vadd.f32 %v839, %v809
        %v841 = vadd.f32 %v840, %v810
        %v842 = vadd.f32 %v841, %v811
        %v843 = vadd.f32 %v842, %v812
        %v844 = vadd.f32 %v843, %v813
        %v845 = vadd.f32 %v844, %v814
        %v846 = vadd.f32 %v845, %v815
        %v847 = vadd.f32 %v846, %v816
        %v848 = vadd.f32 %v847, %v817
        %v849 = vadd.f32 %v848, %v818
        %v850 = vadd.f32 %v849, %v819
        %v851 = vadd.f32 %v850, %v820
        %v852 = vadd.f32 %v851, %v821
        %v853 = vadd.f32 %v852, %v822
        %v854 = vadd.f32 %v853, %v823
        %v855 = vadd.f32 %v854, %v824
        %v856 = vadd.f32 %v855, %v825
        %v857 = vadd.f32 %v856, %v826
        %v858 = vadd.f32 %v857, %v827
        %v859 = vadd.f32 %v858, %v828
        %v860 = vadd.f32 %v859, %v829
        %v861 = vadd.f32 %v860, %v830
        %v862 = vadd.f32 %v861, %v831
        %v863 = vrot.slane %v862, 4
        %v864 = vadd.f32 %v862, %v863
        %v865 = vrot.slane %v864, 2
        %v866 = vadd.f32 %v864, %v865
        %v867 = vrot.slane %v866, 1
        %v868 = vadd.f32 %v866, %v867
        %vm869 = vcmask 1040384
        %v870 = vsel %vm869, %v799, %v868
        %871 = vst [vmem:[%s241] sm:$0x3] %v870
        %s872 = sand.u32 %s102, 1
        %s873 = scalar_lea.sflag [#allocation4], %s872
        %s874 = sand.u32 %s102, 1
        %s875 = smul.addr %s874, 128
        %s876 = scalar_lea.vmem [#allocation7], %s875
        %s877 = sand.u32 %s128, 1
        %s878 = scalar_lea.sflag [#allocation9], %s877
        %s879 = sand.u32 %s128, 1
        %s880 = smul.addr %s879, 2
        %s881 = scalar_lea.vmem [#allocation8], %s880
        // Predicated region
        $region41: #{tpu_custom_call.1} parent=31 // pred_check
          %p882 = pneg %p112
        $region42: #{tpu_custom_call.1} parent=31 // pred_check_branch
          %884 = sbr.rel (%p882) target = $region44
        $region43: #{tpu_custom_call.1} parent=31 // pred_region
          %s886 = ssub.s32 2048, 2048
          %887 = vsyncadd %s873, %s886
          %s888 = smul.addr %s26, 32
          %s889 = smul.addr %s888, 64
          %s890 = scalar_lea.hbm %s3, %s889
          %s891 = sshll.u32 %s876, 4
          %s892 = int_to_ptr.vmem [resolvable:$true] %s891
          %897 = dma.vmem_to_hbm [thread:$0]  %s892, 2048, %s890, %s873, 64, 64, 4
        $region44: #{tpu_custom_call.1} parent=31 // pred_fallthru
          _
        // Predicated region
        $region45: #{tpu_custom_call.1} parent=31 // pred_check
          %p898 = pneg %p138
        $region46: #{tpu_custom_call.1} parent=31 // pred_check_branch
          %900 = sbr.rel (%p898) target = $region48
        $region47: #{tpu_custom_call.1} parent=31 // pred_region
          %s902 = ssub.s32 32, 32
          %903 = vsyncadd %s878, %s902
          %s904 = smul.addr %s26, 32
          %s905 = scalar_lea.hbm %s4, %s904
          %s907 = sshll.u32 %s881, 4
          %s908 = int_to_ptr.vmem [resolvable:$true] %s907
          %910 = dma.vmem_to_hbm [thread:$0]  %s908, 32, %s905, %s878
        $region48: #{tpu_custom_call.1} parent=31 // pred_fallthru
          _
      $region32: #{tpu_custom_call.1} parent=5 // pred_fallthru
        _
      %p911 = scmp.le.s32.totalorder 2, %s21
      // Predicated region
      $region49: #{tpu_custom_call.1} parent=5 // pred_check
        %p912 = pneg %p911
      $region50: #{tpu_custom_call.1} parent=5 // pred_check_branch
        %914 = sbr.rel (%p912) target = $region52
      $region51: #{tpu_custom_call.1} parent=5 // pred_region
        %s915 = ssub.s32 %s21, 2
        // Predicated region
        $region53: #{tpu_custom_call.1} parent=51 // pred_check
          %p916 = pneg %p118
        $region54: #{tpu_custom_call.1} parent=51 // pred_check_branch
          %918 = sbr.rel (%p916) target = $region56
        $region55: #{tpu_custom_call.1} parent=51 // pred_region
          %s919 = sand.u32 %s103, 1
          %s920 = scalar_lea.sflag [#allocation4], %s919
          %s921 = sand.u32 %s103, 1
          %s922 = smul.addr %s921, 128
          %s923 = scalar_lea.vmem [#allocation7], %s922
          %924 = dma.done %s920, 2048
        $region56: #{tpu_custom_call.1} parent=51 // pred_fallthru
          _
        // Predicated region
        $region57: #{tpu_custom_call.1} parent=51 // pred_check
          %p925 = pneg %p144
        $region58: #{tpu_custom_call.1} parent=51 // pred_check_branch
          %927 = sbr.rel (%p925) target = $region60
        $region59: #{tpu_custom_call.1} parent=51 // pred_region
          %s928 = sand.u32 %s129, 1
          %s929 = scalar_lea.sflag [#allocation9], %s928
          %s930 = sand.u32 %s129, 1
          %s931 = smul.addr %s930, 2
          %s932 = scalar_lea.vmem [#allocation8], %s931
          %933 = dma.done %s929, 32
        $region60: #{tpu_custom_call.1} parent=51 // pred_fallthru
          _
      $region52: #{tpu_custom_call.1} parent=5 // pred_fallthru
        _
    $region6: #{tpu_custom_call.1} parent=1 // loop_footer
      %s25 = sadd.s32 1, %s21
    $region7: #{tpu_custom_call.1} parent=1 // loop_footer_branch
      %20 = sbr.rel target = $region3
    $region8: #{tpu_custom_call.1} parent=1 // loop_exit
      _
    %934 = vsyncpa [#allocation3], 1
    %s935 = scalar_lea.sflag [#allocation3], 1
    %936 = vsyncpa %s935, 1
    %937 = vsyncpa [#allocation6], 1
    %938 = vsyncpa [#allocation4], 1
    %s939 = scalar_lea.sflag [#allocation4], 1
    %940 = vsyncpa %s939, 1
    %941 = vsyncpa [#allocation9], 1
    %s942 = scalar_lea.sflag [#allocation9], 1
    %943 = vsyncpa %s942, 1

</llo_original>
